<compile_context>
chip_gen: v6e
topology: v6e:2x2x1
jax: 0.10.0
libtpu: 0.0.40
codegen_flags: <defaults>
</compile_context>

<pallas_src>
import jax
import jax.numpy as jnp
from jax.experimental import pallas as pl
from jax.experimental.pallas import tpu as pltpu


def _round_up(x, m):
    return (x + m - 1) // m * m


def _cdiv(a, b):
    return (a + b - 1) // b


# --------------------------------------------------------------------------
# Kernel
# --------------------------------------------------------------------------
def gsae_kernel(x_ref, we_ref, be_ref, wd_ref, bd_ref, o_ref):
    """One (row-tile i, hidden-block j) grid step.

    x_ref  : (TM, Fp)         input rows                  (compute dtype)
    we_ref : (Fp, TH)         encoder weight block j      (contiguous DMA)
    be_ref : (nH, 1, TH) f32  encoder bias, whole-array VMEM resident
    wd_ref : (TH, Fp)         decoder weight block j
    bd_ref : (1, Fp)   f32    decoder bias, whole-array VMEM resident
    o_ref  : (TM, Fp)  f32    output tile; doubles as the decoder accumulator
                              (resident across the arbitrary j axis).
    """
    j = pl.program_id(1)

    @pl.when(j == 0)
    def _init():
        o_ref[...] = jnp.zeros_like(o_ref)

    # Encoder for this hidden block: Linear + ReLU (MXU, f32 accumulation).
    h = jnp.dot(x_ref[...], we_ref[...], preferred_element_type=jnp.float32)
    h = jnp.maximum(h + be_ref[j], 0.0)

    # Decoder partial product for this hidden block, accumulated in f32
    # directly in the output block (no separate scratch accumulator).
    o_ref[...] += jnp.dot(h.astype(wd_ref.dtype), wd_ref[...],
                          preferred_element_type=jnp.float32)

    # Finalize only on the last hidden block: decoder bias + sigmoid in place.
    @pl.when(j == pl.num_programs(1) - 1)
    def _finalize():
        o_ref[...] = jax.nn.sigmoid(o_ref[...] + bd_ref[...])


# --------------------------------------------------------------------------
# Generation-aware configuration / tiling helpers
# --------------------------------------------------------------------------
def _tpu_config():
    """Return (vmem_budget, vmem_ceiling, num_tensorcores, tm_default, th_default)."""
    kind = ""
    try:
        kind = jax.devices()[0].device_kind.lower()
    except Exception:
        pass

    vmem_cap = None
    try:
        info = pltpu.get_tpu_info()
        cap = int(getattr(info, "vmem_capacity_bytes", 0) or 0)
        vmem_cap = cap if cap > 0 else None
    except Exception:
        vmem_cap = None
    if vmem_cap is None:
        if "v5" in kind or "v6" in kind:
            vmem_cap = 128 * 1024 * 1024
        else:
            vmem_cap = 64 * 1024 * 1024      # conservative (covers v7x / unknown)

    if "v7" in kind:                         # 64 MiB VMEM / TC, 2 TCs, 3.2 TB/s HBM
        num_tc, tm_default, th_default = 2, 512, 512
    elif "v6" in kind:                       # 128 MiB VMEM, needs tm~1024 for roofline
        num_tc, tm_default, th_default = 1, 1024, 512
    else:                                    # v5e / unknown: tm=256 near crossover
        num_tc, tm_default, th_default = 1, 256, 1024

    budget = vmem_cap * 3 // 4               # tile-fitting budget
    ceiling = vmem_cap - (8 << 20)           # scoped-VMEM ceiling passed to Mosaic
    return budget, ceiling, num_tc, tm_default, th_default


def _choose_hidden_tile(H, th_target):
    """128-multiple hidden tile that divides a minimally padded Hp."""
    Hp = _round_up(H, 128)
    n_blocks = _cdiv(Hp, max(th_target, 128))
    th_eff = 128 * _cdiv(Hp // 128, n_blocks)
    return th_eff, th_eff * n_blocks, n_blocks


def _choose_row_tile(M, tm_target, num_tc):
    """16-aligned row tile; avoids over-padding and feeds every TensorCore."""
    n_tiles = _cdiv(M, max(tm_target, 16))
    if num_tc > 1:
        n_tiles = max(n_tiles, min(num_tc, _cdiv(M, 16)))
    tm_eff = _round_up(_cdiv(M, n_tiles), 16)
    n_tiles = _cdiv(M, tm_eff)               # rebalance after 16-alignment
    return tm_eff, tm_eff * n_tiles, n_tiles


def _vmem_estimate(tm, th, Fp, n_hidden_blocks, in_itemsize):
    """Per-step VMEM residency (double-buffered operands + resident biases)."""
    est = 2 * tm * Fp * in_itemsize          # x tile (double-buffered)
    est += 2 * Fp * th * in_itemsize         # encoder weight block
    est += 2 * th * Fp * in_itemsize         # decoder weight block
    est += n_hidden_blocks * 8 * th * 4      # encoder bias, resident (sublane-padded)
    est += 8 * Fp * 4                        # decoder bias, resident
    est += 2 * tm * Fp * 4                   # f32 output/accumulator tile
    est += tm * th * 4                       # encoder activation temporary
    return est


# --------------------------------------------------------------------------
# Wrapper
# --------------------------------------------------------------------------
def gsae_forward(x, w_enc, b_enc, w_dec, b_dec, *,
                 tm=None, th=None, compute_dtype=jnp.bfloat16):
    """GSAE.forward: sigmoid(relu(x @ W_enc.T + b_enc) @ W_dec.T + b_dec).

    x may have any leading shape; its last dim must equal feature_size.
    Weights use the PyTorch layout: w_enc (H, F), w_dec (F, H).

    NOTE: the bf16 default casts x / weights / post-ReLU activations to bf16
    before the MXU (f32 accumulation is kept).  Pass compute_dtype=jnp.float32
    for closer parity with the PyTorch f32 forward.
    """
    H, F = w_enc.shape
    assert w_dec.shape == (F, H)
    assert x.shape[-1] == F

    orig_shape = x.shape
    out_dtype = x.dtype
    x2d = x.reshape(-1, F)
    M = x2d.shape[0]

    budget, ceiling, num_tc, tm_default, th_default = _tpu_config()
    tm_target = tm_default if tm is None else int(tm)
    th_target = th_default if th is None else int(th)

    cd = jnp.dtype(compute_dtype)
    isz = cd.itemsize

    Fp = _round_up(F, 128)                   # lane-dense feature padding

    # Hidden tile: 128-multiple, divisor-friendly (no nearly-empty last block).
    th_eff, Hp, nH = _choose_hidden_tile(H, th_target)

    # Row tile: as big as the VMEM budget allows (arithmetic intensity per
    # weight byte ~ tm), 16-aligned, at least num_tc tiles for megacore.
    while True:
        tm_eff, Mp, n_row = _choose_row_tile(M, tm_target, num_tc)
        if _vmem_estimate(tm_eff, th_eff, Fp, nH, isz) <= budget or tm_target <= 64:
            break
        tm_target //= 2
    # If still over budget (very large F), shrink the hidden tile instead.
    while _vmem_estimate(tm_eff, th_eff, Fp, nH, isz) > budget and th_eff > 128:
        th_eff, Hp, nH = _choose_hidden_tile(H, th_eff // 2)

    # ---- Pad / pre-layout parameters (plain-JAX glue outside the kernel) ----
    # Padded rows / features / hidden units carry zero weights & bias: they
    # contribute exactly 0 through ReLU and the decoder matmul, and the padded
    # output region is sliced off below (intentional, not a bug).
    x_p = jnp.zeros((Mp, Fp), cd).at[:M, :F].set(x2d.astype(cd))

    we_pad = jnp.zeros((Fp, Hp), cd).at[:F, :H].set(w_enc.T.astype(cd))
    # (nH, Fp, th): each encoder weight block becomes one contiguous DMA.
    we_blk = we_pad.reshape(Fp, nH, th_eff).transpose(1, 0, 2)

    wd_pad = jnp.zeros((Hp, Fp), cd).at[:H, :F].set(w_dec.T.astype(cd))

    be_blk = (jnp.zeros((Hp,), jnp.float32)
              .at[:H].set(b_enc.astype(jnp.float32))
              .reshape(nH, 1, th_eff))
    bd = jnp.zeros((1, Fp), jnp.float32).at[0, :F].set(b_dec.astype(jnp.float32))

    # Explicit VMEM limit: estimate + ~25% headroom, generation-aware ceiling.
    vmem_est = _vmem_estimate(tm_eff, th_eff, Fp, nH, isz)
    vmem_limit = int(min(ceiling,
                         max(vmem_est + vmem_est // 4 + (4 << 20), 16 << 20)))

    out_p = pl.pallas_call(
        gsae_kernel,
        out_shape=jax.ShapeDtypeStruct((Mp, Fp), jnp.float32),
        grid=(n_row, nH),
        in_specs=[
            # Input rows: depend only on the row tile i.
            pl.BlockSpec((tm_eff, Fp), lambda i, j: (i, 0)),
            # Encoder weight block j: contiguous (Fp, th) slab.
            pl.BlockSpec((pl.Squeezed(), Fp, th_eff), lambda i, j: (j, 0, 0)),
            # Encoder bias: whole array VMEM resident (single copy, no per-step DMA).
            pl.BlockSpec(memory_space=pltpu.MemorySpace.VMEM),
            # Decoder weight block j: contiguous rows of the (Hp, Fp) array.
            pl.BlockSpec((th_eff, Fp), lambda i, j: (j, 0)),
            # Decoder bias: whole array VMEM resident (single copy).
            pl.BlockSpec(memory_space=pltpu.MemorySpace.VMEM),
        ],
        out_specs=pl.BlockSpec((tm_eff, Fp), lambda i, j: (i, 0)),
        compiler_params=pltpu.CompilerParams(
            dimension_semantics=("parallel", "arbitrary"),
            vmem_limit_bytes=vmem_limit),
    )(x_p, we_blk, be_blk, wd_pad, bd)

    # TODO(synk): optional v7x-only fp8 weight storage (native MXU fp8) would
    # halve weight HBM traffic in the weight-DMA-bound regime; kept bf16 here
    # for cross-generation correctness.
    return out_p[:M, :F].astype(out_dtype).reshape(orig_shape)


# --------------------------------------------------------------------------
# Pure-JAX reference
# --------------------------------------------------------------------------
def _reference(x, w_enc, b_enc, w_dec, b_dec, compute_dtype=jnp.float32):
    cd = compute_dtype
    h = jnp.dot(x.astype(cd), w_enc.T.astype(cd),
                preferred_element_type=jnp.float32) + b_enc.astype(jnp.float32)
    h = jnp.maximum(h, 0.0)
    y = jnp.dot(h.astype(cd), w_dec.T.astype(cd),
                preferred_element_type=jnp.float32) + b_dec.astype(jnp.float32)
    return jax.nn.sigmoid(y).astype(x.dtype)


if __name__ == "__main__":
    # Small shapes implied by the module: feature_size (last dim), hidden_size.
    feature_size = 32
    hidden_size = 200            # pads to 256 -> two hidden blocks at th=128
    batch, seq = 4, 8            # input (4, 8, 32) -> 32 flattened rows

    key = jax.random.PRNGKey(0)
    k_x, k_we, k_be, k_wd, k_bd = jax.random.split(key, 5)

    # Deterministic parameter init (PyTorch-Linear-style uniform bounds).
    bound_e = 1.0 / jnp.sqrt(float(feature_size))
    bound_d = 1.0 / jnp.sqrt(float(hidden_size))
    w_enc = jax.random.uniform(k_we, (hidden_size, feature_size),
                               minval=-bound_e, maxval=bound_e, dtype=jnp.float32)
    b_enc = jax.random.uniform(k_be, (hidden_size,),
                               minval=-bound_e, maxval=bound_e, dtype=jnp.float32)
    w_dec = jax.random.uniform(k_wd, (feature_size, hidden_size),
                               minval=-bound_d, maxval=bound_d, dtype=jnp.float32)
    b_dec = jax.random.uniform(k_bd, (feature_size,),
                               minval=-bound_d, maxval=bound_d, dtype=jnp.float32)

    x = jax.random.normal(k_x, (batch, seq, feature_size), dtype=jnp.float32)

    # 1) Full-precision path with small tiles so the grid has multiple row
    #    tiles AND multiple hidden blocks (exercises init/accumulate/finalize).
    out_f32 = gsae_forward(x, w_enc, b_enc, w_dec, b_dec,
                           tm=16, th=128, compute_dtype=jnp.float32)
    out_f32 = jax.block_until_ready(out_f32)
    ref_f32 = _reference(x, w_enc, b_enc, w_dec, b_dec, jnp.float32)
    assert out_f32.shape == x.shape
    assert jnp.allclose(out_f32, ref_f32, atol=1e-4, rtol=1e-4), \
        float(jnp.max(jnp.abs(out_f32 - ref_f32)))

    # 2) Default per-generation configuration: bf16 operands, f32 accumulation,
    #    large lane-dense tiles (collapses to a single grid step at toy shapes).
    out_bf16 = gsae_forward(x, w_enc, b_enc, w_dec, b_dec)
    out_bf16 = jax.block_until_ready(out_bf16)
    ref_bf16 = _reference(x, w_enc, b_enc, w_dec, b_dec, jnp.bfloat16)
    assert out_bf16.shape == x.shape
    assert jnp.allclose(out_bf16, ref_bf16, atol=1e-2, rtol=1e-2), \
        float(jnp.max(jnp.abs(out_bf16 - ref_bf16)))

    print("KERNEL_OK")
</pallas_src>

<mosaic_0001>
module attributes {stable_mosaic.version = 11 : i64} {
  func.func @gsae_kernel(%arg0: i32, %arg1: i32, %arg2: memref<16x128xf32, #tpu.memory_space<vmem>>, %arg3: memref<1x128x128xf32, #tpu.memory_space<vmem>>, %arg4: memref<2x1x128xf32, #tpu.memory_space<vmem>>, %arg5: memref<128x128xf32, #tpu.memory_space<vmem>>, %arg6: memref<1x128xf32, #tpu.memory_space<vmem>>, %arg7: memref<16x128xf32, #tpu.memory_space<vmem>>) attributes {dimension_semantics = [#tpu.dimension_semantics<parallel>, #tpu.dimension_semantics<arbitrary>], iteration_bounds = array<i64: 2, 2>, scalar_prefetch = 0 : i64, scratch_operands = 0 : i64, tpu.core_type = #tpu.core_type<tc>, window_params = [{transform_indices = @transform_0, window_bounds = array<i64: 16, 128>}, {transform_indices = @transform_1, window_bounds = array<i64: 1, 128, 128>}, {pipeline_mode = #tpu.pipeline_mode<synchronous>, transform_indices = @transform_2, window_bounds = array<i64: 2, 1, 128>}, {transform_indices = @transform_3, window_bounds = array<i64: 128, 128>}, {pipeline_mode = #tpu.pipeline_mode<synchronous>, transform_indices = @transform_4, window_bounds = array<i64: 1, 128>}, {transform_indices = @transform_5, window_bounds = array<i64: 16, 128>}]} {
    %c0_i32 = arith.constant 0 : i32
    %0 = arith.cmpi eq, %arg1, %c0_i32 : i32
    %1 = arith.extui %0 : i1 to i32
    %c0_i32_0 = arith.constant 0 : i32
    %2 = arith.cmpi ne, %1, %c0_i32_0 : i32
    scf.if %2 {
      %cst_16 = arith.constant 0.000000e+00 : f32
      %22 = vector.broadcast %cst_16 : f32 to vector<16x128xf32>
      %c0_17 = arith.constant 0 : index
      %c0_18 = arith.constant 0 : index
      %23 = vector.load %arg7[%c0_17, %c0_18] : memref<16x128xf32, #tpu.memory_space<vmem>>, vector<16x128xf32>
      tpu.vector_store %arg7[%c0_17, %c0_18], %22 {strides = array<i32>} : memref<16x128xf32, #tpu.memory_space<vmem>>, vector<16x128xf32>,
    } else {
    }
    %c0 = arith.constant 0 : index
    %c0_1 = arith.constant 0 : index
    %3 = vector.load %arg2[%c0, %c0_1] : memref<16x128xf32, #tpu.memory_space<vmem>>, vector<16x128xf32>
    %c0_2 = arith.constant 0 : index
    %c0_3 = arith.constant 0 : index
    %c0_4 = arith.constant 0 : index
    %4 = vector.load %arg3[%c0_2, %c0_3, %c0_4] : memref<1x128x128xf32, #tpu.memory_space<vmem>>, vector<1x128x128xf32>
    %5 = vector.shape_cast %4 : vector<1x128x128xf32> to vector<128x128xf32>
    %cst = arith.constant dense<0.000000e+00> : vector<16x128xf32>
    %6 = tpu.matmul %3, %5, %cst {dimension_numbers = #tpu.dot_dimension_numbers<[1], [0], [0], [1], [0, 0, 1, 1], [], []>} : vector<16x128xf32>, vector<128x128xf32>, vector<16x128xf32> -> vector<16x128xf32>
    %7 = arith.index_cast %arg1 : i32 to index
    %c0_5 = arith.constant 0 : index
    %c0_6 = arith.constant 0 : index
    %8 = vector.load %arg4[%7, %c0_5, %c0_6] : memref<2x1x128xf32, #tpu.memory_space<vmem>>, vector<1x1x128xf32>
    %9 = vector.shape_cast %8 : vector<1x1x128xf32> to vector<1x128xf32>
    %10 = vector.broadcast %9 : vector<1x128xf32> to vector<16x128xf32>
    %11 = arith.addf %6, %10 : vector<16x128xf32>
    %cst_7 = arith.constant 0.000000e+00 : f32
    %12 = vector.broadcast %cst_7 : f32 to vector<16x128xf32>
    %13 = arith.maximumf %11, %12 : vector<16x128xf32>
    %c0_8 = arith.constant 0 : index
    %c0_9 = arith.constant 0 : index
    %14 = vector.load %arg7[%c0_8, %c0_9] : memref<16x128xf32, #tpu.memory_space<vmem>>, vector<16x128xf32>
    %c0_10 = arith.constant 0 : index
    %c0_11 = arith.constant 0 : index
    %15 = vector.load %arg5[%c0_10, %c0_11] : memref<128x128xf32, #tpu.memory_space<vmem>>, vector<128x128xf32>
    %cst_12 = arith.constant dense<0.000000e+00> : vector<16x128xf32>
    %16 = tpu.matmul %13, %15, %cst_12 {dimension_numbers = #tpu.dot_dimension_numbers<[1], [0], [0], [1], [0, 0, 1, 1], [], []>} : vector<16x128xf32>, vector<128x128xf32>, vector<16x128xf32> -> vector<16x128xf32>
    %17 = arith.addf %14, %16 : vector<16x128xf32>
    %c0_13 = arith.constant 0 : index
    %c0_14 = arith.constant 0 : index
    %18 = vector.load %arg7[%c0_13, %c0_14] : memref<16x128xf32, #tpu.memory_space<vmem>>, vector<16x128xf32>
    tpu.vector_store %arg7[%c0_13, %c0_14], %17 {strides = array<i32>} : memref<16x128xf32, #tpu.memory_space<vmem>>, vector<16x128xf32>,
    %c1_i32 = arith.constant 1 : i32
    %19 = arith.cmpi eq, %arg1, %c1_i32 : i32
    %20 = arith.extui %19 : i1 to i32
    %c0_i32_15 = arith.constant 0 : i32
    %21 = arith.cmpi ne, %20, %c0_i32_15 : i32
    scf.if %21 {
      %c0_16 = arith.constant 0 : index
      %c0_17 = arith.constant 0 : index
      %22 = vector.load %arg7[%c0_16, %c0_17] : memref<16x128xf32, #tpu.memory_space<vmem>>, vector<16x128xf32>
      %c0_18 = arith.constant 0 : index
      %c0_19 = arith.constant 0 : index
      %23 = vector.load %arg6[%c0_18, %c0_19] : memref<1x128xf32, #tpu.memory_space<vmem>>, vector<1x128xf32>
      %24 = vector.broadcast %23 : vector<1x128xf32> to vector<16x128xf32>
      %25 = arith.addf %22, %24 : vector<16x128xf32>
      %26 = arith.negf %25 : vector<16x128xf32>
      %27 = math.exp %26 : vector<16x128xf32>
      %cst_20 = arith.constant 1.000000e+00 : f32
      %28 = vector.broadcast %cst_20 : f32 to vector<16x128xf32>
      %29 = arith.addf %28, %27 : vector<16x128xf32>
      %30 = arith.divf %28, %29 : vector<16x128xf32>
      %c0_21 = arith.constant 0 : index
      %c0_22 = arith.constant 0 : index
      %31 = vector.load %arg7[%c0_21, %c0_22] : memref<16x128xf32, #tpu.memory_space<vmem>>, vector<16x128xf32>
      tpu.vector_store %arg7[%c0_21, %c0_22], %30 {strides = array<i32>} : memref<16x128xf32, #tpu.memory_space<vmem>>, vector<16x128xf32>,
    } else {
    }
    return
  }
  func.func @transform_0(%arg0: i32, %arg1: i32) -> (i32, i32) {
    %c0_i32 = arith.constant 0 : i32
    %c0_i32_0 = arith.constant 0 : i32
    return %arg0, %c0_i32 : i32, i32
  }
  func.func @transform_1(%arg0: i32, %arg1: i32) -> (i32, i32, i32) {
    %c0_i32 = arith.constant 0 : i32
    %c0_i32_0 = arith.constant 0 : i32
    %c0_i32_1 = arith.constant 0 : i32
    return %arg1, %c0_i32, %c0_i32_0 : i32, i32, i32
  }
  func.func @transform_2(%arg0: i32, %arg1: i32) -> (i32, i32, i32) {
    %c0_i32 = arith.constant 0 : i32
    %c0_i32_0 = arith.constant 0 : i32
    %c0_i32_1 = arith.constant 0 : i32
    %c0_i32_2 = arith.constant 0 : i32
    return %c0_i32, %c0_i32_0, %c0_i32_1 : i32, i32, i32
  }
  func.func @transform_3(%arg0: i32, %arg1: i32) -> (i32, i32) {
    %c0_i32 = arith.constant 0 : i32
    %c0_i32_0 = arith.constant 0 : i32
    return %arg1, %c0_i32 : i32, i32
  }
  func.func @transform_4(%arg0: i32, %arg1: i32) -> (i32, i32) {
    %c0_i32 = arith.constant 0 : i32
    %c0_i32_0 = arith.constant 0 : i32
    %c0_i32_1 = arith.constant 0 : i32
    return %c0_i32, %c0_i32_0 : i32, i32
  }
  func.func @transform_5(%arg0: i32, %arg1: i32) -> (i32, i32) {
    %c0_i32 = arith.constant 0 : i32
    %c0_i32_0 = arith.constant 0 : i32
    return %arg0, %c0_i32 : i32, i32
  }
}

</mosaic_0001>

<llo_original>
// kernel: tpu_custom_call.1
$region0: #{tpu_custom_call.1}
  #allocation0 [shape = 'u32[]', space=smem, size = 0x4, offset = 0x4, fixed_abs, tag = 'smem constant byte address 0x4 - core index']
  #allocation1 [shape = 'u32[144,128]{1,0:T(1,128)}', space=vmem, size = 0x12000, scoped, tag = 'internal scratch']
  %s0 = inlined_call_operand.hbm [shape: f32[32,128], index: 0, kind: input, shape index: {}]
  %s1 = inlined_call_operand.hbm [shape: f32[2,128,128], index: 1, kind: input, shape index: {}]
  %s2 = inlined_call_operand.vmem [shape: f32[2,1,128], index: 2, kind: input, shape index: {}]
  %s3 = inlined_call_operand.hbm [shape: f32[256,128], index: 3, kind: input, shape index: {}]
  %s4 = inlined_call_operand.vmem [shape: f32[1,128], index: 4, kind: input, shape index: {}]
  %s5 = inlined_call_operand.hbm [shape: f32[32,128], index: 5, kind: output, shape index: {}]
  %s6 = sld [smem:[#allocation0]]
  $region73: #{tpu_custom_call.1} parent=0
    _
  %s8 = ssub.s32 1, %s6
  %s9 = scalar_select 0, %s8, %s6
  $region1: #{tpu_custom_call.1} parent=0
    #allocation2 [shape = 'u8[16384]{0}', space=vmem, size = 0x4000, scoped, tag = 'input window, operand 0']
    #allocation3 [shape = 's32[2]{0}', space=sflag, size = 0x8, scoped, tag = 'scoped memory for tpu_custom_call.1']
    #allocation4 [shape = 's32[2]{0}', space=sflag, size = 0x8, scoped, tag = 'scoped memory for tpu_custom_call.1']
    #allocation5 [shape = 'u8[131072]{0}', space=vmem, size = 0x20000, scoped, tag = 'input window, operand 1']
    #allocation6 [shape = 's32[2]{0}', space=sflag, size = 0x8, scoped, tag = 'scoped memory for tpu_custom_call.1']
    #allocation7 [shape = 'u8[131072]{0}', space=vmem, size = 0x20000, scoped, tag = 'input window, operand 3']
    #allocation8 [shape = 'u8[16384]{0}', space=vmem, size = 0x4000, scoped, tag = 'output window, operand 0']
    %10 = vsyncpa [#allocation3], 0
    %s11 = scalar_lea.sflag [#allocation3], 1
    %12 = vsyncpa %s11, 0
    %13 = vsyncpa [#allocation6], 0
    %s14 = scalar_lea.sflag [#allocation6], 1
    %15 = vsyncpa %s14, 0
    %16 = vsyncpa [#allocation4], 0
    %s17 = scalar_lea.sflag [#allocation4], 1
    %18 = vsyncpa %s17, 0
    loop: start=0, step=1, limit=6
    $region2: #{tpu_custom_call.1} parent=1 // loop_pre_header
      _
    $region3: #{tpu_custom_call.1} parent=1 // loop_header
      %s20 = sphi 0, %s24
      %p21 = scmp.ge.s32.totalorder %s20, 6
      %s27 = sphi 0, %s39
      %s28 = sphi 0, %s35
      %s29 = sphi 0, %s27
      %s30 = sphi 0, %s28
      %s31 = sphi 0, %s29
      %s32 = sphi 0, %s30
      %s42 = sphi 0, %s44
      %s45 = sphi 0, %s42
      %s46 = sphi 0, %s45
      %s62 = sphi 0, %s46
      %s68 = sphi 0, %s70
      %s71 = sphi 0, %s68
      %s72 = sphi 0, %s71
      %s88 = sphi 0, %s72
      %s92 = sphi 0, %s92
      %s94 = sphi 0, %s92
      %s95 = sphi 0, %s94
      %s109 = sphi 0, %s95
      %s115 = sphi 0, %s117
      %s118 = sphi 0, %s115
      %s119 = sphi 0, %s118
      %s135 = sphi 0, %s119
      %s139 = sphi 0, %s139
      %s141 = sphi 0, %s139
      %s142 = sphi 0, %s141
      %s156 = sphi 0, %s142
      %s162 = sphi 0, %s164
      %s165 = sphi 0, %s162
      %s166 = sphi 0, %s165
      %s182 = sphi 0, %s166
    $region4: #{tpu_custom_call.1} parent=1 // loop_header_branch
      %23 = sbr.rel (%p21) target = $region8
    $region5: #{tpu_custom_call.1} parent=1 // loop_body
      %s25 = ssub.s32 %s20, 1
      %s26 = ssub.s32 %s20, 2
      %s33 = sadd.s32 1, %s28
      %p34 = scmp.ge.s32.totalorder %s33, 2
      %s35 = scalar_select %p34, 0, %s33
      %s36 = sadd.s32 1, %s27
      %s37 = scalar_select %p34, %s36, %s27
      %p38 = scmp.ge.s32.totalorder %s37, 2
      %s39 = scalar_select %p38, 0, %s37
      %s40 = ssub.s32 %s27, %s39
      %p41 = scmp.eq.s32.totalorder %s40, 0
      %s43 = sadd.s32 %s42, 1
      %s44 = scalar_select %p41, %s42, %s43
      %p47 = pneg %p41
      %p48 = scmp.eq.s32.totalorder %s20, 3
      %p49 = por %p47, %p48
      %p50 = scmp.ne.s32.totalorder %s42, %s45
      %p51 = scmp.eq.s32.totalorder %s20, 0
      %p52 = por %p50, %p51
      %p53 = scmp.ne.s32.totalorder %s42, %s45
      %p54 = scmp.eq.s32.totalorder %s25, 3
      %p55 = por %p53, %p54
      %p56 = scmp.ne.s32.totalorder %s45, %s46
      %p57 = scmp.eq.s32.totalorder %s25, 0
      %p58 = por %p56, %p57
      %p59 = scmp.ne.s32.totalorder %s45, %s46
      %p60 = scmp.eq.s32.totalorder %s26, 3
      %p61 = por %p59, %p60
      %p63 = scmp.ne.s32.totalorder %s46, %s62
      %p64 = scmp.eq.s32.totalorder %s26, 0
      %p65 = por %p63, %p64
      %s66 = ssub.s32 %s28, %s35
      %p67 = scmp.eq.s32.totalorder %s66, 0
      %s69 = sadd.s32 %s68, 1
      %s70 = scalar_select %p67, %s68, %s69
      %p73 = pneg %p67
      %p74 = scmp.eq.s32.totalorder %s20, 3
      %p75 = por %p73, %p74
      %p76 = scmp.ne.s32.totalorder %s68, %s71
      %p77 = scmp.eq.s32.totalorder %s20, 0
      %p78 = por %p76, %p77
      %p79 = scmp.ne.s32.totalorder %s68, %s71
      %p80 = scmp.eq.s32.totalorder %s25, 3
      %p81 = por %p79, %p80
      %p82 = scmp.ne.s32.totalorder %s71, %s72
      %p83 = scmp.eq.s32.totalorder %s25, 0
      %p84 = por %p82, %p83
      %p85 = scmp.ne.s32.totalorder %s71, %s72
      %p86 = scmp.eq.s32.totalorder %s26, 3
      %p87 = por %p85, %p86
      %p89 = scmp.ne.s32.totalorder %s72, %s88
      %p90 = scmp.eq.s32.totalorder %s26, 0
      %p91 = por %p89, %p90
      %s93 = sadd.s32 %s92, 1
      %p96 = scmp.eq.s32.totalorder %s20, 3
      %p97 = scmp.ne.s32.totalorder %s92, %s94
      %p98 = scmp.eq.s32.totalorder %s20, 0
      %p99 = por %p97, %p98
      %p100 = scmp.ne.s32.totalorder %s92, %s94
      %p101 = scmp.eq.s32.totalorder %s25, 3
      %p102 = por %p100, %p101
      %p103 = scmp.ne.s32.totalorder %s94, %s95
      %p104 = scmp.eq.s32.totalorder %s25, 0
      %p105 = por %p103, %p104
      %p106 = scmp.ne.s32.totalorder %s94, %s95
      %p107 = scmp.eq.s32.totalorder %s26, 3
      %p108 = por %p106, %p107
      %p110 = scmp.ne.s32.totalorder %s95, %s109
      %p111 = scmp.eq.s32.totalorder %s26, 0
      %p112 = por %p110, %p111
      %s113 = ssub.s32 %s28, %s35
      %p114 = scmp.eq.s32.totalorder %s113, 0
      %s116 = sadd.s32 %s115, 1
      %s117 = scalar_select %p114, %s115, %s116
      %p120 = pneg %p114
      %p121 = scmp.eq.s32.totalorder %s20, 3
      %p122 = por %p120, %p121
      %p123 = scmp.ne.s32.totalorder %s115, %s118
      %p124 = scmp.eq.s32.totalorder %s20, 0
      %p125 = por %p123, %p124
      %p126 = scmp.ne.s32.totalorder %s115, %s118
      %p127 = scmp.eq.s32.totalorder %s25, 3
      %p128 = por %p126, %p127
      %p129 = scmp.ne.s32.totalorder %s118, %s119
      %p130 = scmp.eq.s32.totalorder %s25, 0
      %p131 = por %p129, %p130
      %p132 = scmp.ne.s32.totalorder %s118, %s119
      %p133 = scmp.eq.s32.totalorder %s26, 3
      %p134 = por %p132, %p133
      %p136 = scmp.ne.s32.totalorder %s119, %s135
      %p137 = scmp.eq.s32.totalorder %s26, 0
      %p138 = por %p136, %p137
      %s140 = sadd.s32 %s139, 1
      %p143 = scmp.eq.s32.totalorder %s20, 3
      %p144 = scmp.ne.s32.totalorder %s139, %s141
      %p145 = scmp.eq.s32.totalorder %s20, 0
      %p146 = por %p144, %p145
      %p147 = scmp.ne.s32.totalorder %s139, %s141
      %p148 = scmp.eq.s32.totalorder %s25, 3
      %p149 = por %p147, %p148
      %p150 = scmp.ne.s32.totalorder %s141, %s142
      %p151 = scmp.eq.s32.totalorder %s25, 0
      %p152 = por %p150, %p151
      %p153 = scmp.ne.s32.totalorder %s141, %s142
      %p154 = scmp.eq.s32.totalorder %s26, 3
      %p155 = por %p153, %p154
      %p157 = scmp.ne.s32.totalorder %s142, %s156
      %p158 = scmp.eq.s32.totalorder %s26, 0
      %p159 = por %p157, %p158
      %s160 = ssub.s32 %s27, %s39
      %p161 = scmp.eq.s32.totalorder %s160, 0
      %s163 = sadd.s32 %s162, 1
      %s164 = scalar_select %p161, %s162, %s163
      %p167 = pneg %p161
      %p168 = scmp.eq.s32.totalorder %s20, 3
      %p169 = por %p167, %p168
      %p170 = scmp.ne.s32.totalorder %s162, %s165
      %p171 = scmp.eq.s32.totalorder %s20, 0
      %p172 = por %p170, %p171
      %p173 = scmp.ne.s32.totalorder %s162, %s165
      %p174 = scmp.eq.s32.totalorder %s25, 3
      %p175 = por %p173, %p174
      %p176 = scmp.ne.s32.totalorder %s165, %s166
      %p177 = scmp.eq.s32.totalorder %s25, 0
      %p178 = por %p176, %p177
      %p179 = scmp.ne.s32.totalorder %s165, %s166
      %p180 = scmp.eq.s32.totalorder %s26, 3
      %p181 = por %p179, %p180
      %p183 = scmp.ne.s32.totalorder %s166, %s182
      %p184 = scmp.eq.s32.totalorder %s26, 0
      %p185 = por %p183, %p184
      %p186 = scmp.le.s32.totalorder 1, %s20
      %p187 = scmp.lt.s32.totalorder %s20, 5
      %p188 = pnand %p186, %p187
      %p189 = pneg %p188
      // Predicated region
      $region9: #{tpu_custom_call.1} parent=5 // pred_check
        _
      $region10: #{tpu_custom_call.1} parent=5 // pred_check_branch
        %191 = sbr.rel (%p188) target = $region12
      $region11: #{tpu_custom_call.1} parent=5 // pred_region
        %s192 = ssub.s32 %s20, 1
        // Predicated region
        $region13: #{tpu_custom_call.1} parent=11 // pred_check
          %p193 = pneg %p105
        $region14: #{tpu_custom_call.1} parent=11 // pred_check_branch
          %195 = sbr.rel (%p193) target = $region16
        $region15: #{tpu_custom_call.1} parent=11 // pred_region
          _
        $region16: #{tpu_custom_call.1} parent=11 // pred_fallthru
          _
        // Predicated region
        $region17: #{tpu_custom_call.1} parent=11 // pred_check
          %p196 = pneg %p152
        $region18: #{tpu_custom_call.1} parent=11 // pred_check_branch
          %198 = sbr.rel (%p196) target = $region20
        $region19: #{tpu_custom_call.1} parent=11 // pred_region
          _
        $region20: #{tpu_custom_call.1} parent=11 // pred_fallthru
          _
      $region12: #{tpu_custom_call.1} parent=5 // pred_fallthru
        _
      %p199 = scmp.lt.s32.totalorder %s20, 4
      // Predicated region
      $region21: #{tpu_custom_call.1} parent=5 // pred_check
        %p200 = pneg %p199
      $region22: #{tpu_custom_call.1} parent=5 // pred_check_branch
        %202 = sbr.rel (%p200) target = $region24
      $region23: #{tpu_custom_call.1} parent=5 // pred_region
        // Predicated region
        $region25: #{tpu_custom_call.1} parent=23 // pred_check
          %p203 = pneg %p52
        $region26: #{tpu_custom_call.1} parent=23 // pred_check_branch
          %205 = sbr.rel (%p203) target = $region28
        $region27: #{tpu_custom_call.1} parent=23 // pred_region
          %s206 = sand.u32 %s42, 1
          %s207 = scalar_lea.sflag [#allocation3], %s206
          %s208 = sand.u32 %s42, 1
          %s209 = smul.addr %s208, 16
          %s210 = scalar_lea.vmem [#allocation2], %s209
          %s211 = smul.u32 2, %s27
          %s213 = ssub.s32 256, 256
          %214 = vsyncadd %s207, %s213
          %s215 = smul.addr %s211, 128
          %s216 = scalar_lea.hbm %s0, %s215
          %s217 = sshll.u32 %s210, 4
          %s218 = int_to_ptr.vmem [resolvable:$true] %s217
          %223 = dma.hbm_to_vmem [thread:$0]  %s216, 256, %s218, %s207, 128, 128, 8
        $region28: #{tpu_custom_call.1} parent=23 // pred_fallthru
          _
        // Predicated region
        $region29: #{tpu_custom_call.1} parent=23 // pred_check
          %p224 = pneg %p78
        $region30: #{tpu_custom_call.1} parent=23 // pred_check_branch
          %226 = sbr.rel (%p224) target = $region32
        $region31: #{tpu_custom_call.1} parent=23 // pred_region
          %s227 = sand.u32 %s20, 1
          %s228 = scalar_lea.sflag [#allocation6], %s227
          %s229 = sand.u32 %s68, 1
          %s230 = smul.addr %s229, 128
          %s231 = scalar_lea.vmem [#allocation5], %s230
          %s233 = ssub.s32 2048, 2048
          %234 = vsyncadd %s228, %s233
          %s235 = smul.addr %s28, 16
          %s236 = smul.addr %s235, 128
          %s237 = scalar_lea.hbm %s1, %s236
          %s238 = sshll.u32 %s231, 4
          %s239 = int_to_ptr.vmem [resolvable:$true] %s238
          %244 = dma.hbm_to_vmem [thread:$0]  %s237, 2048, %s239, %s228, 128, 128, 8
        $region32: #{tpu_custom_call.1} parent=23 // pred_fallthru
          _
        // Predicated region
        $region33: #{tpu_custom_call.1} parent=23 // pred_check
          %p245 = pneg %p125
        $region34: #{tpu_custom_call.1} parent=23 // pred_check_branch
          %247 = sbr.rel (%p245) target = $region36
        $region35: #{tpu_custom_call.1} parent=23 // pred_region
          %s248 = sand.u32 %s20, 1
          %s249 = scalar_lea.sflag [#allocation6], %s248
          %s250 = sand.u32 %s115, 1
          %s251 = smul.addr %s250, 128
          %s252 = scalar_lea.vmem [#allocation7], %s251
          %s253 = smul.u32 16, %s28
          %s255 = ssub.s32 2048, 2048
          %256 = vsyncadd %s249, %s255
          %s257 = smul.addr %s253, 128
          %s258 = scalar_lea.hbm %s3, %s257
          %s259 = sshll.u32 %s252, 4
          %s260 = int_to_ptr.vmem [resolvable:$true] %s259
          %265 = dma.hbm_to_vmem [thread:$0]  %s258, 2048, %s260, %s249, 128, 128, 8
        $region36: #{tpu_custom_call.1} parent=23 // pred_fallthru
          _
      $region24: #{tpu_custom_call.1} parent=5 // pred_fallthru
        _
      %p266 = scmp.le.s32.totalorder 1, %s20
      %p267 = scmp.lt.s32.totalorder %s20, 5
      %p268 = pnand %p266, %p267
      %p269 = pneg %p268
      // Predicated region
      $region37: #{tpu_custom_call.1} parent=5 // pred_check
        _
      $region38: #{tpu_custom_call.1} parent=5 // pred_check_branch
        %271 = sbr.rel (%p268) target = $region40
      $region39: #{tpu_custom_call.1} parent=5 // pred_region
        %s272 = ssub.s32 %s20, 1
        %s273 = sand.u32 %s45, 1
        %s274 = scalar_lea.sflag [#allocation3], %s273
        %s275 = sand.u32 %s45, 1
        %s276 = smul.addr %s275, 16
        %s277 = scalar_lea.vmem [#allocation2], %s276
        // Predicated region
        $region41: #{tpu_custom_call.1} parent=39 // pred_check
          %p278 = pneg %p58
        $region42: #{tpu_custom_call.1} parent=39 // pred_check_branch
          %280 = sbr.rel (%p278) target = $region44
        $region43: #{tpu_custom_call.1} parent=39 // pred_region
          %281 = dma.done %s274, 256
        $region44: #{tpu_custom_call.1} parent=39 // pred_fallthru
          _
        %s282 = sand.u32 %s25, 1
        %s283 = scalar_lea.sflag [#allocation6], %s282
        %s284 = sand.u32 %s71, 1
        %s285 = smul.addr %s284, 128
        %s286 = scalar_lea.vmem [#allocation5], %s285
        // Predicated region
        $region45: #{tpu_custom_call.1} parent=39 // pred_check
          %p287 = pneg %p84
        $region46: #{tpu_custom_call.1} parent=39 // pred_check_branch
          %289 = sbr.rel (%p287) target = $region48
        $region47: #{tpu_custom_call.1} parent=39 // pred_region
          %290 = dma.done %s283, 2048
        $region48: #{tpu_custom_call.1} parent=39 // pred_fallthru
          _
        %s291 = sand.u32 %s25, 1
        %s292 = scalar_lea.sflag [#allocation6], %s291
        %s293 = sand.u32 %s118, 1
        %s294 = smul.addr %s293, 128
        %s295 = scalar_lea.vmem [#allocation7], %s294
        // Predicated region
        $region49: #{tpu_custom_call.1} parent=39 // pred_check
          %p296 = pneg %p131
        $region50: #{tpu_custom_call.1} parent=39 // pred_check_branch
          %298 = sbr.rel (%p296) target = $region52
        $region51: #{tpu_custom_call.1} parent=39 // pred_region
          %299 = dma.done %s292, 2048
        $region52: #{tpu_custom_call.1} parent=39 // pred_fallthru
          _
        %s300 = sand.u32 %s45, 1
        %s301 = scalar_lea.sflag [#allocation3], %s300
        %s302 = sand.u32 %s45, 1
        %s303 = smul.addr %s302, 16
        %s304 = scalar_lea.vmem [#allocation2], %s303
        %p305 = pneg %p58
        %p306 = pneg %p55
        %s307 = sand.u32 %s25, 1
        %s308 = scalar_lea.sflag [#allocation6], %s307
        %s309 = sand.u32 %s71, 1
        %s310 = smul.addr %s309, 128
        %s311 = scalar_lea.vmem [#allocation5], %s310
        %p312 = pneg %p84
        %p313 = pneg %p81
        %p314 = pneg %p105
        %p315 = pneg %p102
        %s316 = sand.u32 %s25, 1
        %s317 = scalar_lea.sflag [#allocation6], %s316
        %s318 = sand.u32 %s118, 1
        %s319 = smul.addr %s318, 128
        %s320 = scalar_lea.vmem [#allocation7], %s319
        %p321 = pneg %p131
        %p322 = pneg %p128
        %p323 = pneg %p152
        %p324 = pneg %p149
        %p325 = pneg %p178
        %p326 = pneg %p175
        %s327 = sand.u32 %s165, 1
        %s328 = scalar_lea.sflag [#allocation4], %s327
        %s329 = sand.u32 %s165, 1
        %s330 = smul.addr %s329, 16
        %s331 = scalar_lea.vmem [#allocation8], %s330
        %s332 = smul.u32 2, %s29
        %s333 = smul.u32 16, %s30
        %s334 = smul.u32 2, %s29
        %p335 = scmp.eq.s32.totalorder %s30, 0
        // Predicated region
        $region53: #{tpu_custom_call.1} parent=39 // pred_check
          %p336 = pneg %p335
        $region54: #{tpu_custom_call.1} parent=39 // pred_check_branch
          %338 = sbr.rel (%p336) target = $region56
        $region55: #{tpu_custom_call.1} parent=39 // pred_region
          %339 = vst [vmem:[%s331] sm:$0xff] 0.0
          %340 = vst [vmem:[%s331 + $0x8] sm:$0xff] 0.0
        $region56: #{tpu_custom_call.1} parent=39 // pred_fallthru
          _
        %v341 = vld [vmem:[%s277] sm:$0xff]
        %v342 = vld [vmem:[%s277 + $0x8] sm:$0xff]
        %v343 = vld [vmem:[%s286] sm:$0xff]
        %v344 = vld [vmem:[%s286 + $0x8] sm:$0xff]
        %v345 = vld [vmem:[%s286 + $0x10] sm:$0xff]
        %v346 = vld [vmem:[%s286 + $0x18] sm:$0xff]
        %v347 = vld [vmem:[%s286 + $0x20] sm:$0xff]
        %v348 = vld [vmem:[%s286 + $0x28] sm:$0xff]
        %v349 = vld [vmem:[%s286 + $0x30] sm:$0xff]
        %v350 = vld [vmem:[%s286 + $0x38] sm:$0xff]
        %v351 = vld [vmem:[%s286 + $0x40] sm:$0xff]
        %v352 = vld [vmem:[%s286 + $0x48] sm:$0xff]
        %v353 = vld [vmem:[%s286 + $0x50] sm:$0xff]
        %v354 = vld [vmem:[%s286 + $0x58] sm:$0xff]
        %v355 = vld [vmem:[%s286 + $0x60] sm:$0xff]
        %v356 = vld [vmem:[%s286 + $0x68] sm:$0xff]
        %v357 = vld [vmem:[%s286 + $0x70] sm:$0xff]
        %v358 = vld [vmem:[%s286 + $0x78] sm:$0xff]
        %s359 = scalar_lea.vmem %s2, %s30
        %v360 = vld [vmem:[%s359] sm:$0x1]
        %v362 = vlaneseq
        %v363 = vshrl.u32 %v362, 7
        %v364 = vsub.s32 0, %v363
        %v365 = vrot.slane %v360, %v364
        %367 = vmatprep.subr.mxu0 0.0
        %368 = vmatpush1.msra.mxu0 %v358
        %369 = vmatprep.subr.mxu0 0.0
        %370 = vmatpush1.msra.mxu0 %v357
        %371 = vmatprep.subr.mxu0 0.0
        %372 = vmatpush1.msra.mxu0 %v356
        %373 = vmatprep.subr.mxu0 0.0
        %374 = vmatpush1.msra.mxu0 %v355
        %375 = vmatprep.subr.mxu0 0.0
        %376 = vmatpush1.msra.mxu0 %v354
        %377 = vmatprep.subr.mxu0 0.0
        %378 = vmatpush1.msra.mxu0 %v353
        %379 = vmatprep.subr.mxu0 0.0
        %380 = vmatpush1.msra.mxu0 %v352
        %381 = vmatprep.subr.mxu0 0.0
        %382 = vmatpush1.msra.mxu0 %v351
        %383 = vmatprep.subr.mxu0 0.0
        %384 = vmatpush1.msra.mxu0 %v350
        %385 = vmatprep.subr.mxu0 0.0
        %386 = vmatpush1.msra.mxu0 %v349
        %387 = vmatprep.subr.mxu0 0.0
        %388 = vmatpush1.msra.mxu0 %v348
        %389 = vmatprep.subr.mxu0 0.0
        %390 = vmatpush1.msra.mxu0 %v347
        %391 = vmatprep.subr.mxu0 0.0
        %392 = vmatpush1.msra.mxu0 %v346
        %393 = vmatprep.subr.mxu0 0.0
        %394 = vmatpush1.msra.mxu0 %v345
        %395 = vmatprep.subr.mxu0 0.0
        %396 = vmatpush1.msra.mxu0 %v344
        %397 = vmatprep.subr.mxu0 0.0
        %398 = vmatpush1.msra.mxu0 %v343
        %399 = vmatprep.subr.mxu0 0.0
        %400 = vmatpush2.msra.mxu0 0.0
        %401 = vmatprep.subr.mxu0 0.0
        %402 = vmatpush2.msra.mxu0 0.0
        %403 = vmatprep.subr.mxu0 0.0
        %404 = vmatpush2.msra.mxu0 0.0
        %405 = vmatprep.subr.mxu0 0.0
        %406 = vmatpush2.msra.mxu0 0.0
        %407 = vmatprep.subr.mxu0 0.0
        %408 = vmatpush2.msra.mxu0 0.0
        %409 = vmatprep.subr.mxu0 0.0
        %410 = vmatpush2.msra.mxu0 0.0
        %411 = vmatprep.subr.mxu0 0.0
        %412 = vmatpush2.msra.mxu0 0.0
        %413 = vmatprep.subr.mxu0 0.0
        %414 = vmatpush2.msra.mxu0 0.0
        %415 = vmatprep.subr.mxu0 0.0
        %416 = vmatpush2.msra.mxu0 0.0
        %417 = vmatprep.subr.mxu0 0.0
        %418 = vmatpush2.msra.mxu0 0.0
        %419 = vmatprep.subr.mxu0 0.0
        %420 = vmatpush2.msra.mxu0 0.0
        %421 = vmatprep.subr.mxu0 0.0
        %422 = vmatpush2.msra.mxu0 0.0
        %423 = vmatprep.subr.mxu0 0.0
        %424 = vmatpush2.msra.mxu0 0.0
        %425 = vmatprep.subr.mxu0 0.0
        %426 = vmatpush2.msra.mxu0 0.0
        %427 = vmatprep.subr.mxu0 0.0
        %428 = vmatpush2.msra.mxu0 0.0
        %429 = vmatprep.subr.mxu0 0.0
        %430 = vmatpush2.msra.mxu0 0.0
        %431 = vmatprep.mubr.f32.mxu0 0.0
        %432 = vmatmul.mubr.f32.gmra.mxu0 %v341
        %v433 = vpop.f32.mrf.mxu0
        %v434 = vadd.f32 %v365, %v433
        %v435 = vpop.f32.mrf.mxu0
        %436 = vmatprep.mubr.f32.mxu0 0.0
        %437 = vmatmul.mubr.f32.gmra.mxu0 %v342
        %v438 = vpop.f32.mrf.mxu0
        %v439 = vadd.f32 %v365, %v438
        %v440 = vpop.f32.mrf.mxu0
        %441 = vdwg.mxu0
        %v442 = vmax.f32 %v434, 0.0
        %v443 = vmax.f32 %v439, 0.0
        %v444 = vld [vmem:[%s331] sm:$0xff]
        %v445 = vld [vmem:[%s331 + $0x8] sm:$0xff]
        %v446 = vld [vmem:[%s295] sm:$0xff]
        %v447 = vld [vmem:[%s295 + $0x8] sm:$0xff]
        %v448 = vld [vmem:[%s295 + $0x10] sm:$0xff]
        %v449 = vld [vmem:[%s295 + $0x18] sm:$0xff]
        %v450 = vld [vmem:[%s295 + $0x20] sm:$0xff]
        %v451 = vld [vmem:[%s295 + $0x28] sm:$0xff]
        %v452 = vld [vmem:[%s295 + $0x30] sm:$0xff]
        %v453 = vld [vmem:[%s295 + $0x38] sm:$0xff]
        %v454 = vld [vmem:[%s295 + $0x40] sm:$0xff]
        %v455 = vld [vmem:[%s295 + $0x48] sm:$0xff]
        %v456 = vld [vmem:[%s295 + $0x50] sm:$0xff]
        %v457 = vld [vmem:[%s295 + $0x58] sm:$0xff]
        %v458 = vld [vmem:[%s295 + $0x60] sm:$0xff]
        %v459 = vld [vmem:[%s295 + $0x68] sm:$0xff]
        %v460 = vld [vmem:[%s295 + $0x70] sm:$0xff]
        %v461 = vld [vmem:[%s295 + $0x78] sm:$0xff]
        %462 = vmatprep.subr.mxu0 0.0
        %463 = vmatpush1.msra.mxu0 %v461
        %464 = vmatprep.subr.mxu0 0.0
        %465 = vmatpush1.msra.mxu0 %v460
        %466 = vmatprep.subr.mxu0 0.0
        %467 = vmatpush1.msra.mxu0 %v459
        %468 = vmatprep.subr.mxu0 0.0
        %469 = vmatpush1.msra.mxu0 %v458
        %470 = vmatprep.subr.mxu0 0.0
        %471 = vmatpush1.msra.mxu0 %v457
        %472 = vmatprep.subr.mxu0 0.0
        %473 = vmatpush1.msra.mxu0 %v456
        %474 = vmatprep.subr.mxu0 0.0
        %475 = vmatpush1.msra.mxu0 %v455
        %476 = vmatprep.subr.mxu0 0.0
        %477 = vmatpush1.msra.mxu0 %v454
        %478 = vmatprep.subr.mxu0 0.0
        %479 = vmatpush1.msra.mxu0 %v453
        %480 = vmatprep.subr.mxu0 0.0
        %481 = vmatpush1.msra.mxu0 %v452
        %482 = vmatprep.subr.mxu0 0.0
        %483 = vmatpush1.msra.mxu0 %v451
        %484 = vmatprep.subr.mxu0 0.0
        %485 = vmatpush1.msra.mxu0 %v450
        %486 = vmatprep.subr.mxu0 0.0
        %487 = vmatpush1.msra.mxu0 %v449
        %488 = vmatprep.subr.mxu0 0.0
        %489 = vmatpush1.msra.mxu0 %v448
        %490 = vmatprep.subr.mxu0 0.0
        %491 = vmatpush1.msra.mxu0 %v447
        %492 = vmatprep.subr.mxu0 0.0
        %493 = vmatpush1.msra.mxu0 %v446
        %494 = vmatprep.subr.mxu0 0.0
        %495 = vmatpush2.msra.mxu0 0.0
        %496 = vmatprep.subr.mxu0 0.0
        %497 = vmatpush2.msra.mxu0 0.0
        %498 = vmatprep.subr.mxu0 0.0
        %499 = vmatpush2.msra.mxu0 0.0
        %500 = vmatprep.subr.mxu0 0.0
        %501 = vmatpush2.msra.mxu0 0.0
        %502 = vmatprep.subr.mxu0 0.0
        %503 = vmatpush2.msra.mxu0 0.0
        %504 = vmatprep.subr.mxu0 0.0
        %505 = vmatpush2.msra.mxu0 0.0
        %506 = vmatprep.subr.mxu0 0.0
        %507 = vmatpush2.msra.mxu0 0.0
        %508 = vmatprep.subr.mxu0 0.0
        %509 = vmatpush2.msra.mxu0 0.0
        %510 = vmatprep.subr.mxu0 0.0
        %511 = vmatpush2.msra.mxu0 0.0
        %512 = vmatprep.subr.mxu0 0.0
        %513 = vmatpush2.msra.mxu0 0.0
        %514 = vmatprep.subr.mxu0 0.0
        %515 = vmatpush2.msra.mxu0 0.0
        %516 = vmatprep.subr.mxu0 0.0
        %517 = vmatpush2.msra.mxu0 0.0
        %518 = vmatprep.subr.mxu0 0.0
        %519 = vmatpush2.msra.mxu0 0.0
        %520 = vmatprep.subr.mxu0 0.0
        %521 = vmatpush2.msra.mxu0 0.0
        %522 = vmatprep.subr.mxu0 0.0
        %523 = vmatpush2.msra.mxu0 0.0
        %524 = vmatprep.subr.mxu0 0.0
        %525 = vmatpush2.msra.mxu0 0.0
        %526 = vmatprep.mubr.f32.mxu0 0.0
        %527 = vmatmul.mubr.f32.gmra.mxu0 %v442
        %v528 = vpop.f32.mrf.mxu0
        %v529 = vadd.f32 0.0, %v528
        %v530 = vpop.f32.mrf.mxu0
        %531 = vmatprep.mubr.f32.mxu0 0.0
        %532 = vmatmul.mubr.f32.gmra.mxu0 %v443
        %v533 = vpop.f32.mrf.mxu0
        %v534 = vadd.f32 0.0, %v533
        %v535 = vpop.f32.mrf.mxu0
        %536 = vdwg.mxu0
        %v537 = vadd.f32 %v444, %v529
        %v538 = vadd.f32 %v445, %v534
        %539 = vst [vmem:[%s331] sm:$0xff] %v537
        %540 = vst [vmem:[%s331 + $0x8] sm:$0xff] %v538
        %p541 = scmp.eq.s32.totalorder %s30, 1
        // Predicated region
        $region57: #{tpu_custom_call.1} parent=39 // pred_check
          %p542 = pneg %p541
        $region58: #{tpu_custom_call.1} parent=39 // pred_check_branch
          %544 = sbr.rel (%p542) target = $region60
        $region59: #{tpu_custom_call.1} parent=39 // pred_region
          %v545 = vld [vmem:[%s331] sm:$0xff]
          %v546 = vld [vmem:[%s331 + $0x8] sm:$0xff]
          %v547 = vld [vmem:[%s4] sm:$0x1]
          %v549 = vlaneseq
          %v550 = vshrl.u32 %v549, 7
          %v551 = vsub.s32 0, %v550
          %v552 = vrot.slane %v547, %v551
          %v554 = vadd.f32 %v545, %v552
          %v555 = vadd.f32 %v546, %v552
          %v556 = vxor.u32 %v554, 2147483648
          %v557 = vxor.u32 %v555, 2147483648
          %v558 = vmul.f32 %v556, 1.442695
          %v559 = vpow.pop %v558
          %v560 = vmul.f32 %v557, 1.442695
          %v561 = vpow.pop %v560
          %v562 = vadd.f32 %v559, 1.0
          %v563 = vadd.f32 %v561, 1.0
          %v564 = vrcp.pop %v562
          %v565 = vmul.f32 1.0, %v564
          %v566 = vrcp.pop %v563
          %v567 = vmul.f32 1.0, %v566
          %568 = vst [vmem:[%s331] sm:$0xff] %v565
          %569 = vst [vmem:[%s331 + $0x8] sm:$0xff] %v567
        $region60: #{tpu_custom_call.1} parent=39 // pred_fallthru
          _
        %s570 = sand.u32 %s165, 1
        %s571 = scalar_lea.sflag [#allocation4], %s570
        %s572 = sand.u32 %s165, 1
        %s573 = smul.addr %s572, 16
        %s574 = scalar_lea.vmem [#allocation8], %s573
        // Predicated region
        $region61: #{tpu_custom_call.1} parent=39 // pred_check
          %p575 = pneg %p175
        $region62: #{tpu_custom_call.1} parent=39 // pred_check_branch
          %577 = sbr.rel (%p575) target = $region64
        $region63: #{tpu_custom_call.1} parent=39 // pred_region
          %s578 = smul.u32 2, %s29
          %s580 = ssub.s32 256, 256
          %581 = vsyncadd %s571, %s580
          %s582 = smul.addr %s578, 128
          %s583 = scalar_lea.hbm %s5, %s582
          %s584 = sshll.u32 %s574, 4
          %s585 = int_to_ptr.vmem [resolvable:$true] %s584
          %590 = dma.vmem_to_hbm [thread:$0]  %s585, 256, %s583, %s571, 128, 128, 8
        $region64: #{tpu_custom_call.1} parent=39 // pred_fallthru
          _
      $region40: #{tpu_custom_call.1} parent=5 // pred_fallthru
        _
      %p591 = scmp.le.s32.totalorder 2, %s20
      // Predicated region
      $region65: #{tpu_custom_call.1} parent=5 // pred_check
        %p592 = pneg %p591
      $region66: #{tpu_custom_call.1} parent=5 // pred_check_branch
        %594 = sbr.rel (%p592) target = $region68
      $region67: #{tpu_custom_call.1} parent=5 // pred_region
        %s595 = ssub.s32 %s20, 2
        // Predicated region
        $region69: #{tpu_custom_call.1} parent=67 // pred_check
          %p596 = pneg %p181
        $region70: #{tpu_custom_call.1} parent=67 // pred_check_branch
          %598 = sbr.rel (%p596) target = $region72
        $region71: #{tpu_custom_call.1} parent=67 // pred_region
          %s599 = sand.u32 %s166, 1
          %s600 = scalar_lea.sflag [#allocation4], %s599
          %s601 = sand.u32 %s166, 1
          %s602 = smul.addr %s601, 16
          %s603 = scalar_lea.vmem [#allocation8], %s602
          %604 = dma.done %s600, 256
        $region72: #{tpu_custom_call.1} parent=67 // pred_fallthru
          _
      $region68: #{tpu_custom_call.1} parent=5 // pred_fallthru
        _
    $region6: #{tpu_custom_call.1} parent=1 // loop_footer
      %s24 = sadd.s32 1, %s20
    $region7: #{tpu_custom_call.1} parent=1 // loop_footer_branch
      %19 = sbr.rel target = $region3
    $region8: #{tpu_custom_call.1} parent=1 // loop_exit
      _
    %605 = vsyncpa [#allocation3], 1
    %s606 = scalar_lea.sflag [#allocation3], 1
    %607 = vsyncpa %s606, 1
    %608 = vsyncpa [#allocation6], 1
    %s609 = scalar_lea.sflag [#allocation6], 1
    %610 = vsyncpa %s609, 1
    %611 = vsyncpa [#allocation4], 1
    %s612 = scalar_lea.sflag [#allocation4], 1
    %613 = vsyncpa %s612, 1

</llo_original>
